<compile_context>
chip_gen: v6e
topology: v6e:2x2x1
jax: 0.10.0
libtpu: 0.0.40
codegen_flags: <defaults>
</compile_context>

<pallas_src>
import functools

import jax
import jax.numpy as jnp
from jax import lax
from jax.experimental import pallas as pl
from jax.experimental.pallas import tpu as pltpu


# ------------------------------ Pallas kernels ------------------------------

def _tapmm_kernel(x_ref, w_ref, o_ref):
    # x_ref: (tm, K) bf16;  w_ref: (K, 64*Cout) bf16 (VMEM-resident);
    # o_ref: (tm, 64*Cout) f32  -> lane-dense MXU matmul over all 64 taps.
    o_ref[...] = jnp.dot(x_ref[...], w_ref[...],
                         preferred_element_type=jnp.float32)


def _stats_kernel(z_ref, mean_ref, rstd_ref, *, s_total):
    # InstanceNorm pass 1: accumulate per-channel sum / sum-of-squares over the
    # S tiles of one instance, finalize to mean / rstd (single-pass variance).
    si = pl.program_id(1)

    @pl.when(si == 0)
    def _():
        mean_ref[...] = jnp.zeros_like(mean_ref)
        rstd_ref[...] = jnp.zeros_like(rstd_ref)

    z = z_ref[...].astype(jnp.float32)                       # (1, C, ts)
    mean_ref[...] += jnp.sum(z, axis=-1, keepdims=True)      # running sum
    rstd_ref[...] += jnp.sum(z * z, axis=-1, keepdims=True)  # running sum of sq

    @pl.when(si == pl.num_programs(1) - 1)
    def _():
        mean = mean_ref[...] / s_total
        var = rstd_ref[...] / s_total - mean * mean
        mean_ref[...] = mean
        rstd_ref[...] = lax.rsqrt(var + 1e-5)                # EUP rsqrt


def _norm_lrelu_kernel(z_ref, mean_ref, rstd_ref, o_ref):
    # InstanceNorm pass 2: normalize + LeakyReLU(0.2), S-tiled, lane-dense.
    z = z_ref[...].astype(jnp.float32)                 # (1, C, ts)
    yn = (z - mean_ref[...]) * rstd_ref[...]           # (1, C, 1) lane-broadcast
    o_ref[...] = jnp.where(yn >= 0.0, yn, 0.2 * yn).astype(o_ref.dtype)


# ----------------------------- Pallas wrappers ------------------------------

def _pick_tile(n, candidates):
    for t in candidates:
        if n % t == 0:
            return t
    return None


def _pallas_tap_matmul(x_flat, w_flat):
    """(M, Cin) @ (Cin, 64*Cout) -> (M, 64*Cout) f32 on the MXU (bf16 inputs)."""
    M, K = x_flat.shape
    Nout = w_flat.shape[1]

    # Pad the (small) contraction dim to the MXU-native width; zero padding is
    # exact and negligible (x/W are tiny next to the lane-dense output).
    Kp = ((K + 127) // 128) * 128
    if Kp != K:
        x_flat = jnp.pad(x_flat, ((0, 0), (0, Kp - K)))
        w_flat = jnp.pad(w_flat, ((0, Kp - K), (0, 0)))

    tm = _pick_tile(M, (512, 256, 128, 64, 32, 16, 8))
    Mp = M
    if tm is None:                                   # ragged M fallback only
        Mp = ((M + 7) // 8) * 8
        x_flat = jnp.pad(x_flat, ((0, Mp - M), (0, 0)))
        tm = _pick_tile(Mp, (512, 256, 128, 64, 32, 16, 8))

    out = pl.pallas_call(
        _tapmm_kernel,
        out_shape=jax.ShapeDtypeStruct((Mp, Nout), jnp.float32),
        grid_spec=pltpu.PrefetchScalarGridSpec(
            num_scalar_prefetch=0,
            grid=(Mp // tm,),
            in_specs=[
                pl.BlockSpec((tm, Kp), lambda i: (i, 0)),
                # whole weight stays VMEM-resident (constant block index)
                pl.BlockSpec((Kp, Nout), lambda i: (0, 0)),
            ],
            out_specs=pl.BlockSpec((tm, Nout), lambda i: (i, 0)),
        ),
        compiler_params=pltpu.CompilerParams(
            dimension_semantics=("parallel",)),
    )(x_flat, w_flat)
    return out if Mp == M else out[:M]


def _pallas_instnorm_lrelu(z):
    """InstanceNorm3d(affine=False) + LeakyReLU(0.2) on z: (N, C, S), S last."""
    N, C, S = z.shape
    ts = _pick_tile(S, (2048, 1024, 512, 256, 128)) or S
    n_s = S // ts

    mean, rstd = pl.pallas_call(
        functools.partial(_stats_kernel, s_total=float(S)),
        out_shape=(jax.ShapeDtypeStruct((N, C, 1), jnp.float32),
                   jax.ShapeDtypeStruct((N, C, 1), jnp.float32)),
        grid_spec=pltpu.PrefetchScalarGridSpec(
            num_scalar_prefetch=0,
            grid=(N, n_s),
            in_specs=[pl.BlockSpec((1, C, ts), lambda n, s: (n, 0, s))],
            out_specs=(pl.BlockSpec((1, C, 1), lambda n, s: (n, 0, 0)),
                       pl.BlockSpec((1, C, 1), lambda n, s: (n, 0, 0))),
        ),
        compiler_params=pltpu.CompilerParams(
            dimension_semantics=("parallel", "arbitrary")),
    )(z)

    out = pl.pallas_call(
        _norm_lrelu_kernel,
        out_shape=jax.ShapeDtypeStruct((N, C, S), z.dtype),
        grid_spec=pltpu.PrefetchScalarGridSpec(
            num_scalar_prefetch=0,
            grid=(N, n_s),
            in_specs=[
                pl.BlockSpec((1, C, ts), lambda n, s: (n, 0, s)),
                pl.BlockSpec((1, C, 1), lambda n, s: (n, 0, 0)),
                pl.BlockSpec((1, C, 1), lambda n, s: (n, 0, 0)),
            ],
            out_specs=pl.BlockSpec((1, C, ts), lambda n, s: (n, 0, s)),
        ),
        compiler_params=pltpu.CompilerParams(
            dimension_semantics=("parallel", "parallel")),
    )(z, mean, rstd)
    return out


# --------------------------- overlap-add (XLA glue) --------------------------

def _shift_fwd(t, axis):       # result[a] = t[a-1], result[0] = 0
    pad = [(0, 0)] * t.ndim
    pad[axis] = (1, 0)
    return lax.slice_in_dim(jnp.pad(t, pad), 0, t.shape[axis], axis=axis)


def _shift_back(t, axis):      # result[a] = t[a+1], result[-1] = 0
    pad = [(0, 0)] * t.ndim
    pad[axis] = (0, 1)
    return lax.slice_in_dim(jnp.pad(t, pad), 1, t.shape[axis] + 1, axis=axis)


def _overlap_add_dim(t, pos_ax, tap_ax):
    """Fold one kernel-tap axis (len 4) into its spatial axis (L -> 2L).

    Transposed conv with stride 2, pad 1, k=4: output index o = 2*i + k - 1.
      even o=2a   : (i=a, k=1) + (i=a-1, k=3)
      odd  o=2a+1 : (i=a, k=2) + (i=a+1, k=0)
    """
    k0 = lax.index_in_dim(t, 0, axis=tap_ax, keepdims=False)
    k1 = lax.index_in_dim(t, 1, axis=tap_ax, keepdims=False)
    k2 = lax.index_in_dim(t, 2, axis=tap_ax, keepdims=False)
    k3 = lax.index_in_dim(t, 3, axis=tap_ax, keepdims=False)
    even = k1 + _shift_fwd(k3, pos_ax)
    odd = k2 + _shift_back(k0, pos_ax)
    out = jnp.stack([even, odd], axis=pos_ax + 1)
    shape = list(even.shape)
    shape[pos_ax] *= 2
    return out.reshape(shape)


# -------------------------------- forward pass -------------------------------

def conv_transpose_block(x, weight, bias=None):
    """x: (N, Cin, D, H, W); weight: (Cin, Cout, 4, 4, 4); bias: (Cout,).

    The conv bias is exactly cancelled by InstanceNorm3d(affine=False) mean
    subtraction, so it is dropped from the compute path.
    """
    del bias
    N, Cin, D, H, W = x.shape
    Cout = weight.shape[1]
    Do, Ho, Wo = 2 * D, 2 * H, 2 * W

    # Pallas hot path 1: per-input-voxel matmul over all 64 kernel taps.
    x_flat = x.transpose(0, 2, 3, 4, 1).reshape(N * D * H * W, Cin)
    w_flat = weight.transpose(0, 2, 3, 4, 1).reshape(Cin, 4 * 4 * 4 * Cout)
    y = _pallas_tap_matmul(x_flat.astype(jnp.bfloat16),
                           w_flat.astype(jnp.bfloat16))
    y = y.reshape(N, D, H, W, 4, 4, 4, Cout)

    # XLA glue: structured overlap-add of the taps onto the stride-2 grid.
    y = _overlap_add_dim(y, pos_ax=1, tap_ax=4)   # (N, 2D,  H,  W, 4, 4, Cout)
    y = _overlap_add_dim(y, pos_ax=2, tap_ax=4)   # (N, 2D, 2H,  W, 4,    Cout)
    y = _overlap_add_dim(y, pos_ax=3, tap_ax=4)   # (N, 2D, 2H, 2W,       Cout)

    # channels-first / flat-spatial (lane-dense S-last layout; this transpose
    # is needed anyway to return NCDHW).
    z = y.transpose(0, 4, 1, 2, 3).reshape(N, Cout, Do * Ho * Wo)

    # Pallas hot path 2: InstanceNorm3d + LeakyReLU(0.2), S-tiled two-pass.
    out = _pallas_instnorm_lrelu(z)
    return out.reshape(N, Cout, Do, Ho, Wo)


# ------------------------------ pure-JAX reference ---------------------------

def _reference(x, weight, bias):
    w_conv = jnp.flip(weight, axis=(2, 3, 4)).transpose(1, 0, 2, 3, 4)
    dn = lax.conv_dimension_numbers(x.shape, w_conv.shape,
                                    ('NCDHW', 'OIDHW', 'NCDHW'))
    y = lax.conv_general_dilated(x, w_conv, window_strides=(1, 1, 1),
                                 padding=[(2, 2)] * 3, lhs_dilation=(2, 2, 2),
                                 rhs_dilation=(1, 1, 1), dimension_numbers=dn,
                                 precision=lax.Precision.HIGHEST)
    y = y + bias[None, :, None, None, None]
    mean = y.mean(axis=(2, 3, 4), keepdims=True)
    var = ((y - mean) ** 2).mean(axis=(2, 3, 4), keepdims=True)
    yn = (y - mean) / jnp.sqrt(var + 1e-5)
    return jnp.where(yn >= 0.0, yn, 0.2 * yn)


# ------------------------------------ main -----------------------------------

if __name__ == "__main__":
    key = jax.random.PRNGKey(0)
    kx, kw, kb = jax.random.split(key, 3)

    N, Cin, Cout = 2, 4, 8
    D = H = W = 4
    x = jax.random.normal(kx, (N, Cin, D, H, W), jnp.float32)

    # nn.ConvTranspose3d weight: (in_channels, out_channels, kD, kH, kW)
    bound = 1.0 / float(jnp.sqrt(Cin * 4 * 4 * 4))
    weight = jax.random.uniform(kw, (Cin, Cout, 4, 4, 4), jnp.float32,
                                minval=-bound, maxval=bound)
    bias = jax.random.uniform(kb, (Cout,), jnp.float32,
                              minval=-bound, maxval=bound)

    out = jax.jit(conv_transpose_block)(x, weight, bias)
    out = jax.block_until_ready(out)
    assert out.shape == (N, Cout, 2 * D, 2 * H, 2 * W), out.shape

    # Strict check vs the same math on bf16-quantized inputs (isolates the
    # intentional bf16 MXU input rounding from any kernel bug).
    xq = x.astype(jnp.bfloat16).astype(jnp.float32)
    wq = weight.astype(jnp.bfloat16).astype(jnp.float32)
    err_q = float(jnp.max(jnp.abs(out - _reference(xq, wq, bias))))
    assert err_q < 1e-3, f"max abs err vs bf16-input reference {err_q}"

    # Relaxed check vs the full-f32 reference (bf16 input rounding only).
    err = float(jnp.max(jnp.abs(out - _reference(x, weight, bias))))
    assert err < 1e-1, f"max abs err vs f32 reference {err}"

    print("KERNEL_OK")
</pallas_src>

<mosaic_0001>
module attributes {stable_mosaic.version = 11 : i64} {
  func.func @_tapmm_kernel(%arg0: i32, %arg1: memref<128x128xbf16, #tpu.memory_space<vmem>>, %arg2: memref<128x512xbf16, #tpu.memory_space<vmem>>, %arg3: memref<128x512xf32, #tpu.memory_space<vmem>>) attributes {dimension_semantics = [#tpu.dimension_semantics<parallel>], iteration_bounds = array<i64: 1>, scalar_prefetch = 0 : i64, scratch_operands = 0 : i64, tpu.core_type = #tpu.core_type<tc>, window_params = [{transform_indices = @transform_0, window_bounds = array<i64: 128, 128>}, {pipeline_mode = #tpu.pipeline_mode<synchronous>, transform_indices = @transform_1, window_bounds = array<i64: 128, 512>}, {transform_indices = @transform_2, window_bounds = array<i64: 128, 512>}]} {
    %c0 = arith.constant 0 : index
    %c0_0 = arith.constant 0 : index
    %0 = vector.load %arg1[%c0, %c0_0] : memref<128x128xbf16, #tpu.memory_space<vmem>>, vector<128x128xbf16>
    %c0_1 = arith.constant 0 : index
    %c0_2 = arith.constant 0 : index
    %1 = vector.load %arg2[%c0_1, %c0_2] : memref<128x512xbf16, #tpu.memory_space<vmem>>, vector<128x512xbf16>
    %cst = arith.constant dense<0.000000e+00> : vector<128x512xf32>
    %2 = tpu.matmul %0, %1, %cst {dimension_numbers = #tpu.dot_dimension_numbers<[1], [0], [0], [1], [0, 0, 1, 1], [], []>} : vector<128x128xbf16>, vector<128x512xbf16>, vector<128x512xf32> -> vector<128x512xf32>
    %c0_3 = arith.constant 0 : index
    %c0_4 = arith.constant 0 : index
    %3 = vector.load %arg3[%c0_3, %c0_4] : memref<128x512xf32, #tpu.memory_space<vmem>>, vector<128x512xf32>
    tpu.vector_store %arg3[%c0_3, %c0_4], %2 {strides = array<i32>} : memref<128x512xf32, #tpu.memory_space<vmem>>, vector<128x512xf32>,
    return
  }
  func.func @transform_0(%arg0: i32) -> (i32, i32) {
    %c0_i32 = arith.constant 0 : i32
    %c0_i32_0 = arith.constant 0 : i32
    return %arg0, %c0_i32 : i32, i32
  }
  func.func @transform_1(%arg0: i32) -> (i32, i32) {
    %c0_i32 = arith.constant 0 : i32
    %c0_i32_0 = arith.constant 0 : i32
    %c0_i32_1 = arith.constant 0 : i32
    return %c0_i32, %c0_i32_0 : i32, i32
  }
  func.func @transform_2(%arg0: i32) -> (i32, i32) {
    %c0_i32 = arith.constant 0 : i32
    %c0_i32_0 = arith.constant 0 : i32
    return %arg0, %c0_i32 : i32, i32
  }
}

module attributes {stable_mosaic.version = 11 : i64} {
  func.func @_stats_kernel(%arg0: i32, %arg1: i32, %arg2: memref<1x8x512xf32, #tpu.memory_space<vmem>>, %arg3: memref<1x8x1xf32, #tpu.memory_space<vmem>>, %arg4: memref<1x8x1xf32, #tpu.memory_space<vmem>>) attributes {dimension_semantics = [#tpu.dimension_semantics<parallel>, #tpu.dimension_semantics<arbitrary>], iteration_bounds = array<i64: 2, 1>, scalar_prefetch = 0 : i64, scratch_operands = 0 : i64, tpu.core_type = #tpu.core_type<tc>, window_params = [{transform_indices = @transform_0, window_bounds = array<i64: 1, 8, 512>}, {transform_indices = @transform_1, window_bounds = array<i64: 1, 8, 1>}, {transform_indices = @transform_2, window_bounds = array<i64: 1, 8, 1>}]} {
    %c0_i32 = arith.constant 0 : i32
    %0 = arith.cmpi eq, %arg1, %c0_i32 : i32
    %1 = arith.extui %0 : i1 to i32
    %c0_i32_0 = arith.constant 0 : i32
    %2 = arith.cmpi ne, %1, %c0_i32_0 : i32
    scf.if %2 {
      %cst_18 = arith.constant 0.000000e+00 : f32
      %18 = vector.broadcast %cst_18 : f32 to vector<1x8x1xf32>
      %c0_19 = arith.constant 0 : index
      %c0_20 = arith.constant 0 : index
      %c0_21 = arith.constant 0 : index
      %19 = vector.load %arg3[%c0_19, %c0_20, %c0_21] : memref<1x8x1xf32, #tpu.memory_space<vmem>>, vector<1x8x1xf32>
      tpu.vector_store %arg3[%c0_19, %c0_20, %c0_21], %18 {strides = array<i32>} : memref<1x8x1xf32, #tpu.memory_space<vmem>>, vector<1x8x1xf32>,
      %cst_22 = arith.constant 0.000000e+00 : f32
      %20 = vector.broadcast %cst_22 : f32 to vector<1x8x1xf32>
      %c0_23 = arith.constant 0 : index
      %c0_24 = arith.constant 0 : index
      %c0_25 = arith.constant 0 : index
      %21 = vector.load %arg4[%c0_23, %c0_24, %c0_25] : memref<1x8x1xf32, #tpu.memory_space<vmem>>, vector<1x8x1xf32>
      tpu.vector_store %arg4[%c0_23, %c0_24, %c0_25], %20 {strides = array<i32>} : memref<1x8x1xf32, #tpu.memory_space<vmem>>, vector<1x8x1xf32>,
    } else {
    }
    %c0 = arith.constant 0 : index
    %c0_1 = arith.constant 0 : index
    %c0_2 = arith.constant 0 : index
    %3 = vector.load %arg2[%c0, %c0_1, %c0_2] : memref<1x8x512xf32, #tpu.memory_space<vmem>>, vector<1x8x512xf32>
    %c0_3 = arith.constant 0 : index
    %c0_4 = arith.constant 0 : index
    %c0_5 = arith.constant 0 : index
    %4 = vector.load %arg3[%c0_3, %c0_4, %c0_5] : memref<1x8x1xf32, #tpu.memory_space<vmem>>, vector<1x8x1xf32>
    %cst = arith.constant dense<0.000000e+00> : vector<1x8xf32>
    %5 = vector.multi_reduction <add>, %3, %cst [2] : vector<1x8x512xf32> to vector<1x8xf32>
    %6 = vector.shape_cast %5 : vector<1x8xf32> to vector<1x8x1xf32>
    %7 = arith.addf %4, %6 : vector<1x8x1xf32>
    %c0_6 = arith.constant 0 : index
    %c0_7 = arith.constant 0 : index
    %c0_8 = arith.constant 0 : index
    %8 = vector.load %arg3[%c0_6, %c0_7, %c0_8] : memref<1x8x1xf32, #tpu.memory_space<vmem>>, vector<1x8x1xf32>
    tpu.vector_store %arg3[%c0_6, %c0_7, %c0_8], %7 {strides = array<i32>} : memref<1x8x1xf32, #tpu.memory_space<vmem>>, vector<1x8x1xf32>,
    %c0_9 = arith.constant 0 : index
    %c0_10 = arith.constant 0 : index
    %c0_11 = arith.constant 0 : index
    %9 = vector.load %arg4[%c0_9, %c0_10, %c0_11] : memref<1x8x1xf32, #tpu.memory_space<vmem>>, vector<1x8x1xf32>
    %10 = arith.mulf %3, %3 : vector<1x8x512xf32>
    %cst_12 = arith.constant dense<0.000000e+00> : vector<1x8xf32>
    %11 = vector.multi_reduction <add>, %10, %cst_12 [2] : vector<1x8x512xf32> to vector<1x8xf32>
    %12 = vector.shape_cast %11 : vector<1x8xf32> to vector<1x8x1xf32>
    %13 = arith.addf %9, %12 : vector<1x8x1xf32>
    %c0_13 = arith.constant 0 : index
    %c0_14 = arith.constant 0 : index
    %c0_15 = arith.constant 0 : index
    %14 = vector.load %arg4[%c0_13, %c0_14, %c0_15] : memref<1x8x1xf32, #tpu.memory_space<vmem>>, vector<1x8x1xf32>
    tpu.vector_store %arg4[%c0_13, %c0_14, %c0_15], %13 {strides = array<i32>} : memref<1x8x1xf32, #tpu.memory_space<vmem>>, vector<1x8x1xf32>,
    %c0_i32_16 = arith.constant 0 : i32
    %15 = arith.cmpi eq, %arg1, %c0_i32_16 : i32
    %16 = arith.extui %15 : i1 to i32
    %c0_i32_17 = arith.constant 0 : i32
    %17 = arith.cmpi ne, %16, %c0_i32_17 : i32
    scf.if %17 {
      %c0_18 = arith.constant 0 : index
      %c0_19 = arith.constant 0 : index
      %c0_20 = arith.constant 0 : index
      %18 = vector.load %arg3[%c0_18, %c0_19, %c0_20] : memref<1x8x1xf32, #tpu.memory_space<vmem>>, vector<1x8x1xf32>
      %cst_21 = arith.constant 5.120000e+02 : f32
      %19 = vector.broadcast %cst_21 : f32 to vector<1x8x1xf32>
      %20 = arith.divf %18, %19 : vector<1x8x1xf32>
      %c0_22 = arith.constant 0 : index
      %c0_23 = arith.constant 0 : index
      %c0_24 = arith.constant 0 : index
      %21 = vector.load %arg4[%c0_22, %c0_23, %c0_24] : memref<1x8x1xf32, #tpu.memory_space<vmem>>, vector<1x8x1xf32>
      %cst_25 = arith.constant 5.120000e+02 : f32
      %22 = vector.broadcast %cst_25 : f32 to vector<1x8x1xf32>
      %23 = arith.divf %21, %22 : vector<1x8x1xf32>
      %24 = arith.mulf %20, %20 : vector<1x8x1xf32>
      %25 = arith.subf %23, %24 : vector<1x8x1xf32>
      %c0_26 = arith.constant 0 : index
      %c0_27 = arith.constant 0 : index
      %c0_28 = arith.constant 0 : index
      %26 = vector.load %arg3[%c0_26, %c0_27, %c0_28] : memref<1x8x1xf32, #tpu.memory_space<vmem>>, vector<1x8x1xf32>
      tpu.vector_store %arg3[%c0_26, %c0_27, %c0_28], %20 {strides = array<i32>} : memref<1x8x1xf32, #tpu.memory_space<vmem>>, vector<1x8x1xf32>,
      %cst_29 = arith.constant 9.99999974E-6 : f32
      %27 = vector.broadcast %cst_29 : f32 to vector<1x8x1xf32>
      %28 = arith.addf %25, %27 : vector<1x8x1xf32>
      %29 = math.rsqrt %28 : vector<1x8x1xf32>
      %c0_30 = arith.constant 0 : index
      %c0_31 = arith.constant 0 : index
      %c0_32 = arith.constant 0 : index
      %30 = vector.load %arg4[%c0_30, %c0_31, %c0_32] : memref<1x8x1xf32, #tpu.memory_space<vmem>>, vector<1x8x1xf32>
      tpu.vector_store %arg4[%c0_30, %c0_31, %c0_32], %29 {strides = array<i32>} : memref<1x8x1xf32, #tpu.memory_space<vmem>>, vector<1x8x1xf32>,
    } else {
    }
    return
  }
  func.func @transform_0(%arg0: i32, %arg1: i32) -> (i32, i32, i32) {
    %c0_i32 = arith.constant 0 : i32
    %c0_i32_0 = arith.constant 0 : i32
    return %arg0, %c0_i32, %arg1 : i32, i32, i32
  }
  func.func @transform_1(%arg0: i32, %arg1: i32) -> (i32, i32, i32) {
    %c0_i32 = arith.constant 0 : i32
    %c0_i32_0 = arith.constant 0 : i32
    %c0_i32_1 = arith.constant 0 : i32
    return %arg0, %c0_i32, %c0_i32_0 : i32, i32, i32
  }
  func.func @transform_2(%arg0: i32, %arg1: i32) -> (i32, i32, i32) {
    %c0_i32 = arith.constant 0 : i32
    %c0_i32_0 = arith.constant 0 : i32
    %c0_i32_1 = arith.constant 0 : i32
    return %arg0, %c0_i32, %c0_i32_0 : i32, i32, i32
  }
}

module attributes {stable_mosaic.version = 11 : i64} {
  func.func @_norm_lrelu_kernel(%arg0: i32, %arg1: i32, %arg2: memref<1x8x512xf32, #tpu.memory_space<vmem>>, %arg3: memref<1x8x1xf32, #tpu.memory_space<vmem>>, %arg4: memref<1x8x1xf32, #tpu.memory_space<vmem>>, %arg5: memref<1x8x512xf32, #tpu.memory_space<vmem>>) attributes {dimension_semantics = [#tpu.dimension_semantics<parallel>, #tpu.dimension_semantics<parallel>], iteration_bounds = array<i64: 2, 1>, scalar_prefetch = 0 : i64, scratch_operands = 0 : i64, tpu.core_type = #tpu.core_type<tc>, window_params = [{transform_indices = @transform_0, window_bounds = array<i64: 1, 8, 512>}, {transform_indices = @transform_1, window_bounds = array<i64: 1, 8, 1>}, {transform_indices = @transform_2, window_bounds = array<i64: 1, 8, 1>}, {transform_indices = @transform_3, window_bounds = array<i64: 1, 8, 512>}]} {
    %c0 = arith.constant 0 : index
    %c0_0 = arith.constant 0 : index
    %c0_1 = arith.constant 0 : index
    %0 = vector.load %arg2[%c0, %c0_0, %c0_1] : memref<1x8x512xf32, #tpu.memory_space<vmem>>, vector<1x8x512xf32>
    %c0_2 = arith.constant 0 : index
    %c0_3 = arith.constant 0 : index
    %c0_4 = arith.constant 0 : index
    %1 = vector.load %arg3[%c0_2, %c0_3, %c0_4] : memref<1x8x1xf32, #tpu.memory_space<vmem>>, vector<1x8x1xf32>
    %2 = vector.broadcast %1 : vector<1x8x1xf32> to vector<1x8x512xf32>
    %3 = arith.subf %0, %2 : vector<1x8x512xf32>
    %c0_5 = arith.constant 0 : index
    %c0_6 = arith.constant 0 : index
    %c0_7 = arith.constant 0 : index
    %4 = vector.load %arg4[%c0_5, %c0_6, %c0_7] : memref<1x8x1xf32, #tpu.memory_space<vmem>>, vector<1x8x1xf32>
    %5 = vector.broadcast %4 : vector<1x8x1xf32> to vector<1x8x512xf32>
    %6 = arith.mulf %3, %5 : vector<1x8x512xf32>
    %cst = arith.constant 0.000000e+00 : f32
    %7 = vector.broadcast %cst : f32 to vector<1x8x512xf32>
    %8 = arith.cmpf oge, %6, %7 : vector<1x8x512xf32>
    %cst_8 = arith.constant 2.000000e-01 : f32
    %9 = vector.broadcast %cst_8 : f32 to vector<1x8x512xf32>
    %10 = arith.mulf %9, %6 : vector<1x8x512xf32>
    %11 = arith.select %8, %6, %10 : vector<1x8x512xi1>, vector<1x8x512xf32>
    %c0_9 = arith.constant 0 : index
    %c0_10 = arith.constant 0 : index
    %c0_11 = arith.constant 0 : index
    %12 = vector.load %arg5[%c0_9, %c0_10, %c0_11] : memref<1x8x512xf32, #tpu.memory_space<vmem>>, vector<1x8x512xf32>
    tpu.vector_store %arg5[%c0_9, %c0_10, %c0_11], %11 {strides = array<i32>} : memref<1x8x512xf32, #tpu.memory_space<vmem>>, vector<1x8x512xf32>,
    return
  }
  func.func @transform_0(%arg0: i32, %arg1: i32) -> (i32, i32, i32) {
    %c0_i32 = arith.constant 0 : i32
    %c0_i32_0 = arith.constant 0 : i32
    return %arg0, %c0_i32, %arg1 : i32, i32, i32
  }
  func.func @transform_1(%arg0: i32, %arg1: i32) -> (i32, i32, i32) {
    %c0_i32 = arith.constant 0 : i32
    %c0_i32_0 = arith.constant 0 : i32
    %c0_i32_1 = arith.constant 0 : i32
    return %arg0, %c0_i32, %c0_i32_0 : i32, i32, i32
  }
  func.func @transform_2(%arg0: i32, %arg1: i32) -> (i32, i32, i32) {
    %c0_i32 = arith.constant 0 : i32
    %c0_i32_0 = arith.constant 0 : i32
    %c0_i32_1 = arith.constant 0 : i32
    return %arg0, %c0_i32, %c0_i32_0 : i32, i32, i32
  }
  func.func @transform_3(%arg0: i32, %arg1: i32) -> (i32, i32, i32) {
    %c0_i32 = arith.constant 0 : i32
    %c0_i32_0 = arith.constant 0 : i32
    return %arg0, %c0_i32, %arg1 : i32, i32, i32
  }
}

</mosaic_0001>

<llo_original>
// kernel: conv_transpose_block.3
$region0: #{conv_transpose_block.3}
  #allocation0 [shape = 'u32[]', space=smem, size = 0x4, offset = 0x4, fixed_abs, tag = 'smem constant byte address 0x4 - core index']
  #allocation1 [shape = 'u32[144,128]{1,0:T(1,128)}', space=vmem, size = 0x12000, scoped, tag = 'internal scratch']
  %s0 = inlined_call_operand.vmem [shape: bf16[128,128], index: 0, kind: input, shape index: {}]
  %s1 = inlined_call_operand.vmem [shape: bf16[128,512], index: 1, kind: input, shape index: {}]
  %s2 = inlined_call_operand.vmem [shape: f32[128,512], index: 2, kind: output, shape index: {}]
  %s3 = sld [smem:[#allocation0]]
  $region18: #{conv_transpose_block.3} parent=0
    _
  %s5 = ssub.s32 1, %s3
  %s6 = scalar_select 0, %s5, %s3
  // Predicated region
  $region2: #{conv_transpose_block.3} parent=0 // pred_check
    _
  $region3: #{conv_transpose_block.3} parent=0 // pred_check_branch
    %8 = sbr.rel (0) target = $region5
  $region4: #{conv_transpose_block.3} parent=0 // pred_region
    _
  $region5: #{conv_transpose_block.3} parent=0 // pred_fallthru
    _
  // Predicated region
  $region6: #{conv_transpose_block.3} parent=0 // pred_check
    _
  $region7: #{conv_transpose_block.3} parent=0 // pred_check_branch
    %10 = sbr.rel (0) target = $region9
  $region8: #{conv_transpose_block.3} parent=0 // pred_region
    _
  $region9: #{conv_transpose_block.3} parent=0 // pred_fallthru
    _
  %v12 = vld [vmem:[%s0] sm:$0xf]
  %v13 = vld [vmem:[%s0 + $0x4] sm:$0xf]
  %v14 = vld [vmem:[%s0 + $0x8] sm:$0xf]
  %v15 = vld [vmem:[%s0 + $0xc] sm:$0xf]
  %v16 = vld [vmem:[%s0 + $0x10] sm:$0xf]
  %v17 = vld [vmem:[%s0 + $0x14] sm:$0xf]
  %v18 = vld [vmem:[%s0 + $0x18] sm:$0xf]
  %v19 = vld [vmem:[%s0 + $0x1c] sm:$0xf]
  %v20 = vld [vmem:[%s0 + $0x20] sm:$0xf]
  %v21 = vld [vmem:[%s0 + $0x24] sm:$0xf]
  %v22 = vld [vmem:[%s0 + $0x28] sm:$0xf]
  %v23 = vld [vmem:[%s0 + $0x2c] sm:$0xf]
  %v24 = vld [vmem:[%s0 + $0x30] sm:$0xf]
  %v25 = vld [vmem:[%s0 + $0x34] sm:$0xf]
  %v26 = vld [vmem:[%s0 + $0x38] sm:$0xf]
  %v27 = vld [vmem:[%s0 + $0x3c] sm:$0xf]
  %v28 = vld [vmem:[%s1] sm:$0xff]
  %v29 = vld [vmem:[%s1 + $0x8] sm:$0xff]
  %v30 = vld [vmem:[%s1 + $0x10] sm:$0xff]
  %v31 = vld [vmem:[%s1 + $0x18] sm:$0xff]
  %v32 = vld [vmem:[%s1 + $0x20] sm:$0xff]
  %v33 = vld [vmem:[%s1 + $0x28] sm:$0xff]
  %v34 = vld [vmem:[%s1 + $0x30] sm:$0xff]
  %v35 = vld [vmem:[%s1 + $0x38] sm:$0xff]
  %v36 = vld [vmem:[%s1 + $0x40] sm:$0xff]
  %v37 = vld [vmem:[%s1 + $0x48] sm:$0xff]
  %v38 = vld [vmem:[%s1 + $0x50] sm:$0xff]
  %v39 = vld [vmem:[%s1 + $0x58] sm:$0xff]
  %v40 = vld [vmem:[%s1 + $0x60] sm:$0xff]
  %v41 = vld [vmem:[%s1 + $0x68] sm:$0xff]
  %v42 = vld [vmem:[%s1 + $0x70] sm:$0xff]
  %v43 = vld [vmem:[%s1 + $0x78] sm:$0xff]
  %v44 = vld [vmem:[%s1 + $0x80] sm:$0xff]
  %v45 = vld [vmem:[%s1 + $0x88] sm:$0xff]
  %v46 = vld [vmem:[%s1 + $0x90] sm:$0xff]
  %v47 = vld [vmem:[%s1 + $0x98] sm:$0xff]
  %v48 = vld [vmem:[%s1 + $0xa0] sm:$0xff]
  %v49 = vld [vmem:[%s1 + $0xa8] sm:$0xff]
  %v50 = vld [vmem:[%s1 + $0xb0] sm:$0xff]
  %v51 = vld [vmem:[%s1 + $0xb8] sm:$0xff]
  %v52 = vld [vmem:[%s1 + $0xc0] sm:$0xff]
  %v53 = vld [vmem:[%s1 + $0xc8] sm:$0xff]
  %v54 = vld [vmem:[%s1 + $0xd0] sm:$0xff]
  %v55 = vld [vmem:[%s1 + $0xd8] sm:$0xff]
  %v56 = vld [vmem:[%s1 + $0xe0] sm:$0xff]
  %v57 = vld [vmem:[%s1 + $0xe8] sm:$0xff]
  %v58 = vld [vmem:[%s1 + $0xf0] sm:$0xff]
  %v59 = vld [vmem:[%s1 + $0xf8] sm:$0xff]
  %v76 = vunpack.c.l.b16 %v12
  %v77 = vunpack.c.l.b16 %v13
  %v78 = vunpack.c.l.b16 %v14
  %v79 = vunpack.c.l.b16 %v15
  %v80 = vunpack.c.l.b16 %v16
  %v81 = vunpack.c.l.b16 %v17
  %v82 = vunpack.c.l.b16 %v18
  %v83 = vunpack.c.l.b16 %v19
  %v84 = vunpack.c.l.b16 %v20
  %v85 = vunpack.c.l.b16 %v21
  %v86 = vunpack.c.l.b16 %v22
  %v87 = vunpack.c.l.b16 %v23
  %v88 = vunpack.c.l.b16 %v24
  %v89 = vunpack.c.l.b16 %v25
  %v90 = vunpack.c.l.b16 %v26
  %v91 = vunpack.c.l.b16 %v27
  %v92 = vpack.c.b16 %v77, %v76
  %v93 = vpack.c.b16 %v79, %v78
  %v94 = vpack.c.b16 %v81, %v80
  %v95 = vpack.c.b16 %v83, %v82
  %v96 = vpack.c.b16 %v85, %v84
  %v97 = vpack.c.b16 %v87, %v86
  %v98 = vpack.c.b16 %v89, %v88
  %v99 = vpack.c.b16 %v91, %v90
  %v140 = vunpack.c.l.b16 %v28
  %v141 = vunpack.c.h.b16 %v28
  %v142 = vunpack.c.l.b16 %v29
  %v143 = vunpack.c.h.b16 %v29
  %v144 = vunpack.c.l.b16 %v30
  %v145 = vunpack.c.h.b16 %v30
  %v146 = vunpack.c.l.b16 %v31
  %v147 = vunpack.c.h.b16 %v31
  %v148 = vunpack.c.l.b16 %v32
  %v149 = vunpack.c.h.b16 %v32
  %v150 = vunpack.c.l.b16 %v33
  %v151 = vunpack.c.h.b16 %v33
  %v152 = vunpack.c.l.b16 %v34
  %v153 = vunpack.c.h.b16 %v34
  %v154 = vunpack.c.l.b16 %v35
  %v155 = vunpack.c.h.b16 %v35
  %v156 = vunpack.c.l.b16 %v36
  %v157 = vunpack.c.h.b16 %v36
  %v158 = vunpack.c.l.b16 %v37
  %v159 = vunpack.c.h.b16 %v37
  %v160 = vunpack.c.l.b16 %v38
  %v161 = vunpack.c.h.b16 %v38
  %v162 = vunpack.c.l.b16 %v39
  %v163 = vunpack.c.h.b16 %v39
  %v164 = vunpack.c.l.b16 %v40
  %v165 = vunpack.c.h.b16 %v40
  %v166 = vunpack.c.l.b16 %v41
  %v167 = vunpack.c.h.b16 %v41
  %v168 = vunpack.c.l.b16 %v42
  %v169 = vunpack.c.h.b16 %v42
  %v170 = vunpack.c.l.b16 %v43
  %v171 = vunpack.c.h.b16 %v43
  %v172 = vunpack.c.l.b16 %v44
  %v173 = vunpack.c.h.b16 %v44
  %v174 = vunpack.c.l.b16 %v45
  %v175 = vunpack.c.h.b16 %v45
  %v176 = vunpack.c.l.b16 %v46
  %v177 = vunpack.c.h.b16 %v46
  %v178 = vunpack.c.l.b16 %v47
  %v179 = vunpack.c.h.b16 %v47
  %v180 = vunpack.c.l.b16 %v48
  %v181 = vunpack.c.h.b16 %v48
  %v182 = vunpack.c.l.b16 %v49
  %v183 = vunpack.c.h.b16 %v49
  %v184 = vunpack.c.l.b16 %v50
  %v185 = vunpack.c.h.b16 %v50
  %v186 = vunpack.c.l.b16 %v51
  %v187 = vunpack.c.h.b16 %v51
  %v188 = vunpack.c.l.b16 %v52
  %v189 = vunpack.c.h.b16 %v52
  %v190 = vunpack.c.l.b16 %v53
  %v191 = vunpack.c.h.b16 %v53
  %v192 = vunpack.c.l.b16 %v54
  %v193 = vunpack.c.h.b16 %v54
  %v194 = vunpack.c.l.b16 %v55
  %v195 = vunpack.c.h.b16 %v55
  %v196 = vunpack.c.l.b16 %v56
  %v197 = vunpack.c.h.b16 %v56
  %v198 = vunpack.c.l.b16 %v57
  %v199 = vunpack.c.h.b16 %v57
  %v200 = vunpack.c.l.b16 %v58
  %v201 = vunpack.c.h.b16 %v58
  %v202 = vunpack.c.l.b16 %v59
  %v203 = vunpack.c.h.b16 %v59
  %v204 = vpack.c.b16 %v144, %v140
  %v205 = vpack.c.b16 %v145, %v141
  %v206 = vpack.c.b16 %v146, %v142
  %v207 = vpack.c.b16 %v147, %v143
  %v208 = vpack.c.b16 %v152, %v148
  %v209 = vpack.c.b16 %v153, %v149
  %v210 = vpack.c.b16 %v154, %v150
  %v211 = vpack.c.b16 %v155, %v151
  %v212 = vpack.c.b16 %v160, %v156
  %v213 = vpack.c.b16 %v161, %v157
  %v214 = vpack.c.b16 %v162, %v158
  %v215 = vpack.c.b16 %v163, %v159
  %v216 = vpack.c.b16 %v168, %v164
  %v217 = vpack.c.b16 %v169, %v165
  %v218 = vpack.c.b16 %v170, %v166
  %v219 = vpack.c.b16 %v171, %v167
  %v220 = vpack.c.b16 %v176, %v172
  %v221 = vpack.c.b16 %v177, %v173
  %v222 = vpack.c.b16 %v178, %v174
  %v223 = vpack.c.b16 %v179, %v175
  %v224 = vpack.c.b16 %v184, %v180
  %v225 = vpack.c.b16 %v185, %v181
  %v226 = vpack.c.b16 %v186, %v182
  %v227 = vpack.c.b16 %v187, %v183
  %v228 = vpack.c.b16 %v192, %v188
  %v229 = vpack.c.b16 %v193, %v189
  %v230 = vpack.c.b16 %v194, %v190
  %v231 = vpack.c.b16 %v195, %v191
  %v232 = vpack.c.b16 %v200, %v196
  %v233 = vpack.c.b16 %v201, %v197
  %v234 = vpack.c.b16 %v202, %v198
  %v235 = vpack.c.b16 %v203, %v199
  %268 = vmatprep.subr.bf16.mxu0 %v233
  %269 = vmatpush1.bf16.msra.mxu0 %v232
  %270 = vmatprep.subr.bf16.mxu0 %v229
  %271 = vmatpush1.bf16.msra.mxu0 %v228
  %272 = vmatprep.subr.bf16.mxu0 %v225
  %273 = vmatpush1.bf16.msra.mxu0 %v224
  %274 = vmatprep.subr.bf16.mxu0 %v221
  %275 = vmatpush1.bf16.msra.mxu0 %v220
  %276 = vmatprep.subr.bf16.mxu0 %v217
  %277 = vmatpush1.bf16.msra.mxu0 %v216
  %278 = vmatprep.subr.bf16.mxu0 %v213
  %279 = vmatpush1.bf16.msra.mxu0 %v212
  %280 = vmatprep.subr.bf16.mxu0 %v209
  %281 = vmatpush1.bf16.msra.mxu0 %v208
  %282 = vmatprep.subr.bf16.mxu0 %v205
  %283 = vmatpush1.bf16.msra.mxu0 %v204
  %284 = vmatprep.subr.bf16.mxu0 0
  %285 = vmatpush2.bf16.msra.mxu0 0
  %286 = vmatprep.subr.bf16.mxu0 0
  %287 = vmatpush2.bf16.msra.mxu0 0
  %288 = vmatprep.subr.bf16.mxu0 0
  %289 = vmatpush2.bf16.msra.mxu0 0
  %290 = vmatprep.subr.bf16.mxu0 0
  %291 = vmatpush2.bf16.msra.mxu0 0
  %292 = vmatprep.subr.bf16.mxu0 0
  %293 = vmatpush2.bf16.msra.mxu0 0
  %294 = vmatprep.subr.bf16.mxu0 0
  %295 = vmatpush2.bf16.msra.mxu0 0
  %296 = vmatprep.subr.bf16.mxu0 0
  %297 = vmatpush2.bf16.msra.mxu0 0
  %298 = vmatprep.subr.bf16.mxu0 0
  %299 = vmatpush2.bf16.msra.mxu0 0
  %300 = vmatprep.mubr.bf16.mxu0 0
  %301 = vmatmul.mubr.bf16.gmra.mxu0 %v92
  %v302 = vpop.f32.mrf.mxu0
  %v303 = vadd.f32 0.0, %v302
  %v304 = vpop.f32.mrf.mxu0
  %v305 = vadd.f32 0.0, %v304
  %v306 = vpop.f32.mrf.mxu0
  %v307 = vadd.f32 0.0, %v306
  %v308 = vpop.f32.mrf.mxu0
  %v309 = vadd.f32 0.0, %v308
  %310 = vmatprep.mubr.bf16.mxu0 0
  %311 = vmatmul.mubr.bf16.gmra.mxu0 %v93
  %v312 = vpop.f32.mrf.mxu0
  %v313 = vadd.f32 0.0, %v312
  %v314 = vpop.f32.mrf.mxu0
  %v315 = vadd.f32 0.0, %v314
  %v316 = vpop.f32.mrf.mxu0
  %v317 = vadd.f32 0.0, %v316
  %v318 = vpop.f32.mrf.mxu0
  %v319 = vadd.f32 0.0, %v318
  %320 = vmatprep.mubr.bf16.mxu0 0
  %321 = vmatmul.mubr.bf16.gmra.mxu0 %v94
  %v322 = vpop.f32.mrf.mxu0
  %v323 = vadd.f32 0.0, %v322
  %v324 = vpop.f32.mrf.mxu0
  %v325 = vadd.f32 0.0, %v324
  %v326 = vpop.f32.mrf.mxu0
  %v327 = vadd.f32 0.0, %v326
  %v328 = vpop.f32.mrf.mxu0
  %v329 = vadd.f32 0.0, %v328
  %330 = vmatprep.mubr.bf16.mxu0 0
  %331 = vmatmul.mubr.bf16.gmra.mxu0 %v95
  %v332 = vpop.f32.mrf.mxu0
  %v333 = vadd.f32 0.0, %v332
  %v334 = vpop.f32.mrf.mxu0
  %v335 = vadd.f32 0.0, %v334
  %v336 = vpop.f32.mrf.mxu0
  %v337 = vadd.f32 0.0, %v336
  %v338 = vpop.f32.mrf.mxu0
  %v339 = vadd.f32 0.0, %v338
  %340 = vmatprep.mubr.bf16.mxu0 0
  %341 = vmatmul.mubr.bf16.gmra.mxu0 %v96
  %v342 = vpop.f32.mrf.mxu0
  %v343 = vadd.f32 0.0, %v342
  %v344 = vpop.f32.mrf.mxu0
  %v345 = vadd.f32 0.0, %v344
  %v346 = vpop.f32.mrf.mxu0
  %v347 = vadd.f32 0.0, %v346
  %v348 = vpop.f32.mrf.mxu0
  %v349 = vadd.f32 0.0, %v348
  %350 = vmatprep.mubr.bf16.mxu0 0
  %351 = vmatmul.mubr.bf16.gmra.mxu0 %v97
  %v352 = vpop.f32.mrf.mxu0
  %v353 = vadd.f32 0.0, %v352
  %v354 = vpop.f32.mrf.mxu0
  %v355 = vadd.f32 0.0, %v354
  %v356 = vpop.f32.mrf.mxu0
  %v357 = vadd.f32 0.0, %v356
  %v358 = vpop.f32.mrf.mxu0
  %v359 = vadd.f32 0.0, %v358
  %360 = vmatprep.mubr.bf16.mxu0 0
  %361 = vmatmul.mubr.bf16.gmra.mxu0 %v98
  %v362 = vpop.f32.mrf.mxu0
  %v363 = vadd.f32 0.0, %v362
  %v364 = vpop.f32.mrf.mxu0
  %v365 = vadd.f32 0.0, %v364
  %v366 = vpop.f32.mrf.mxu0
  %v367 = vadd.f32 0.0, %v366
  %v368 = vpop.f32.mrf.mxu0
  %v369 = vadd.f32 0.0, %v368
  %370 = vmatprep.mubr.bf16.mxu0 0
  %371 = vmatmul.mubr.bf16.gmra.mxu0 %v99
  %v372 = vpop.f32.mrf.mxu0
  %v373 = vadd.f32 0.0, %v372
  %v374 = vpop.f32.mrf.mxu0
  %v375 = vadd.f32 0.0, %v374
  %v376 = vpop.f32.mrf.mxu0
  %v377 = vadd.f32 0.0, %v376
  %v378 = vpop.f32.mrf.mxu0
  %v379 = vadd.f32 0.0, %v378
  %380 = vdwg.mxu0
  %381 = vmatprep.subr.bf16.mxu0 %v235
  %382 = vmatpush1.bf16.msra.mxu0 %v234
  %383 = vmatprep.subr.bf16.mxu0 %v231
  %384 = vmatpush1.bf16.msra.mxu0 %v230
  %385 = vmatprep.subr.bf16.mxu0 %v227
  %386 = vmatpush1.bf16.msra.mxu0 %v226
  %387 = vmatprep.subr.bf16.mxu0 %v223
  %388 = vmatpush1.bf16.msra.mxu0 %v222
  %389 = vmatprep.subr.bf16.mxu0 %v219
  %390 = vmatpush1.bf16.msra.mxu0 %v218
  %391 = vmatprep.subr.bf16.mxu0 %v215
  %392 = vmatpush1.bf16.msra.mxu0 %v214
  %393 = vmatprep.subr.bf16.mxu0 %v211
  %394 = vmatpush1.bf16.msra.mxu0 %v210
  %395 = vmatprep.subr.bf16.mxu0 %v207
  %396 = vmatpush1.bf16.msra.mxu0 %v206
  %397 = vmatprep.subr.bf16.mxu0 0
  %398 = vmatpush2.bf16.msra.mxu0 0
  %399 = vmatprep.subr.bf16.mxu0 0
  %400 = vmatpush2.bf16.msra.mxu0 0
  %401 = vmatprep.subr.bf16.mxu0 0
  %402 = vmatpush2.bf16.msra.mxu0 0
  %403 = vmatprep.subr.bf16.mxu0 0
  %404 = vmatpush2.bf16.msra.mxu0 0
  %405 = vmatprep.subr.bf16.mxu0 0
  %406 = vmatpush2.bf16.msra.mxu0 0
  %407 = vmatprep.subr.bf16.mxu0 0
  %408 = vmatpush2.bf16.msra.mxu0 0
  %409 = vmatprep.subr.bf16.mxu0 0
  %410 = vmatpush2.bf16.msra.mxu0 0
  %411 = vmatprep.subr.bf16.mxu0 0
  %412 = vmatpush2.bf16.msra.mxu0 0
  %413 = vmatprep.mubr.bf16.mxu0 0
  %414 = vmatmul.mubr.bf16.gmra.mxu0 %v92
  %v415 = vpop.f32.mrf.mxu0
  %v416 = vadd.f32 0.0, %v415
  %v417 = vpop.f32.mrf.mxu0
  %v418 = vadd.f32 0.0, %v417
  %v419 = vpop.f32.mrf.mxu0
  %v420 = vadd.f32 0.0, %v419
  %v421 = vpop.f32.mrf.mxu0
  %v422 = vadd.f32 0.0, %v421
  %423 = vmatprep.mubr.bf16.mxu0 0
  %424 = vmatmul.mubr.bf16.gmra.mxu0 %v93
  %v425 = vpop.f32.mrf.mxu0
  %v426 = vadd.f32 0.0, %v425
  %v427 = vpop.f32.mrf.mxu0
  %v428 = vadd.f32 0.0, %v427
  %v429 = vpop.f32.mrf.mxu0
  %v430 = vadd.f32 0.0, %v429
  %v431 = vpop.f32.mrf.mxu0
  %v432 = vadd.f32 0.0, %v431
  %433 = vmatprep.mubr.bf16.mxu0 0
  %434 = vmatmul.mubr.bf16.gmra.mxu0 %v94
  %v435 = vpop.f32.mrf.mxu0
  %v436 = vadd.f32 0.0, %v435
  %v437 = vpop.f32.mrf.mxu0
  %v438 = vadd.f32 0.0, %v437
  %v439 = vpop.f32.mrf.mxu0
  %v440 = vadd.f32 0.0, %v439
  %v441 = vpop.f32.mrf.mxu0
  %v442 = vadd.f32 0.0, %v441
  %443 = vmatprep.mubr.bf16.mxu0 0
  %444 = vmatmul.mubr.bf16.gmra.mxu0 %v95
  %v445 = vpop.f32.mrf.mxu0
  %v446 = vadd.f32 0.0, %v445
  %v447 = vpop.f32.mrf.mxu0
  %v448 = vadd.f32 0.0, %v447
  %v449 = vpop.f32.mrf.mxu0
  %v450 = vadd.f32 0.0, %v449
  %v451 = vpop.f32.mrf.mxu0
  %v452 = vadd.f32 0.0, %v451
  %453 = vmatprep.mubr.bf16.mxu0 0
  %454 = vmatmul.mubr.bf16.gmra.mxu0 %v96
  %v455 = vpop.f32.mrf.mxu0
  %v456 = vadd.f32 0.0, %v455
  %v457 = vpop.f32.mrf.mxu0
  %v458 = vadd.f32 0.0, %v457
  %v459 = vpop.f32.mrf.mxu0
  %v460 = vadd.f32 0.0, %v459
  %v461 = vpop.f32.mrf.mxu0
  %v462 = vadd.f32 0.0, %v461
  %463 = vmatprep.mubr.bf16.mxu0 0
  %464 = vmatmul.mubr.bf16.gmra.mxu0 %v97
  %v465 = vpop.f32.mrf.mxu0
  %v466 = vadd.f32 0.0, %v465
  %v467 = vpop.f32.mrf.mxu0
  %v468 = vadd.f32 0.0, %v467
  %v469 = vpop.f32.mrf.mxu0
  %v470 = vadd.f32 0.0, %v469
  %v471 = vpop.f32.mrf.mxu0
  %v472 = vadd.f32 0.0, %v471
  %473 = vmatprep.mubr.bf16.mxu0 0
  %474 = vmatmul.mubr.bf16.gmra.mxu0 %v98
  %v475 = vpop.f32.mrf.mxu0
  %v476 = vadd.f32 0.0, %v475
  %v477 = vpop.f32.mrf.mxu0
  %v478 = vadd.f32 0.0, %v477
  %v479 = vpop.f32.mrf.mxu0
  %v480 = vadd.f32 0.0, %v479
  %v481 = vpop.f32.mrf.mxu0
  %v482 = vadd.f32 0.0, %v481
  %483 = vmatprep.mubr.bf16.mxu0 0
  %484 = vmatmul.mubr.bf16.gmra.mxu0 %v99
  %v485 = vpop.f32.mrf.mxu0
  %v486 = vadd.f32 0.0, %v485
  %v487 = vpop.f32.mrf.mxu0
  %v488 = vadd.f32 0.0, %v487
  %v489 = vpop.f32.mrf.mxu0
  %v490 = vadd.f32 0.0, %v489
  %v491 = vpop.f32.mrf.mxu0
  %v492 = vadd.f32 0.0, %v491
  %493 = vdwg.mxu0
  %494 = vst [vmem:[%s2] sm:$0xff] %v303
  %495 = vst [vmem:[%s2 + $0x8] sm:$0xff] %v305
  %496 = vst [vmem:[%s2 + $0x10] sm:$0xff] %v416
  %497 = vst [vmem:[%s2 + $0x18] sm:$0xff] %v418
  %498 = vst [vmem:[%s2 + $0x20] sm:$0xff] %v307
  %499 = vst [vmem:[%s2 + $0x28] sm:$0xff] %v309
  %500 = vst [vmem:[%s2 + $0x30] sm:$0xff] %v420
  %501 = vst [vmem:[%s2 + $0x38] sm:$0xff] %v422
  %502 = vst [vmem:[%s2 + $0x40] sm:$0xff] %v313
  %503 = vst [vmem:[%s2 + $0x48] sm:$0xff] %v315
  %504 = vst [vmem:[%s2 + $0x50] sm:$0xff] %v426
  %505 = vst [vmem:[%s2 + $0x58] sm:$0xff] %v428
  %506 = vst [vmem:[%s2 + $0x60] sm:$0xff] %v317
  %507 = vst [vmem:[%s2 + $0x68] sm:$0xff] %v319
  %508 = vst [vmem:[%s2 + $0x70] sm:$0xff] %v430
  %509 = vst [vmem:[%s2 + $0x78] sm:$0xff] %v432
  %510 = vst [vmem:[%s2 + $0x80] sm:$0xff] %v323
  %511 = vst [vmem:[%s2 + $0x88] sm:$0xff] %v325
  %512 = vst [vmem:[%s2 + $0x90] sm:$0xff] %v436
  %513 = vst [vmem:[%s2 + $0x98] sm:$0xff] %v438
  %514 = vst [vmem:[%s2 + $0xa0] sm:$0xff] %v327
  %515 = vst [vmem:[%s2 + $0xa8] sm:$0xff] %v329
  %516 = vst [vmem:[%s2 + $0xb0] sm:$0xff] %v440
  %517 = vst [vmem:[%s2 + $0xb8] sm:$0xff] %v442
  %518 = vst [vmem:[%s2 + $0xc0] sm:$0xff] %v333
  %519 = vst [vmem:[%s2 + $0xc8] sm:$0xff] %v335
  %520 = vst [vmem:[%s2 + $0xd0] sm:$0xff] %v446
  %521 = vst [vmem:[%s2 + $0xd8] sm:$0xff] %v448
  %522 = vst [vmem:[%s2 + $0xe0] sm:$0xff] %v337
  %523 = vst [vmem:[%s2 + $0xe8] sm:$0xff] %v339
  %524 = vst [vmem:[%s2 + $0xf0] sm:$0xff] %v450
  %525 = vst [vmem:[%s2 + $0xf8] sm:$0xff] %v452
  %526 = vst [vmem:[%s2 + $0x100] sm:$0xff] %v343
  %527 = vst [vmem:[%s2 + $0x108] sm:$0xff] %v345
  %528 = vst [vmem:[%s2 + $0x110] sm:$0xff] %v456
  %529 = vst [vmem:[%s2 + $0x118] sm:$0xff] %v458
  %530 = vst [vmem:[%s2 + $0x120] sm:$0xff] %v347
  %531 = vst [vmem:[%s2 + $0x128] sm:$0xff] %v349
  %532 = vst [vmem:[%s2 + $0x130] sm:$0xff] %v460
  %533 = vst [vmem:[%s2 + $0x138] sm:$0xff] %v462
  %534 = vst [vmem:[%s2 + $0x140] sm:$0xff] %v353
  %535 = vst [vmem:[%s2 + $0x148] sm:$0xff] %v355
  %536 = vst [vmem:[%s2 + $0x150] sm:$0xff] %v466
  %537 = vst [vmem:[%s2 + $0x158] sm:$0xff] %v468
  %538 = vst [vmem:[%s2 + $0x160] sm:$0xff] %v357
  %539 = vst [vmem:[%s2 + $0x168] sm:$0xff] %v359
  %540 = vst [vmem:[%s2 + $0x170] sm:$0xff] %v470
  %541 = vst [vmem:[%s2 + $0x178] sm:$0xff] %v472
  %542 = vst [vmem:[%s2 + $0x180] sm:$0xff] %v363
  %543 = vst [vmem:[%s2 + $0x188] sm:$0xff] %v365
  %544 = vst [vmem:[%s2 + $0x190] sm:$0xff] %v476
  %545 = vst [vmem:[%s2 + $0x198] sm:$0xff] %v478
  %546 = vst [vmem:[%s2 + $0x1a0] sm:$0xff] %v367
  %547 = vst [vmem:[%s2 + $0x1a8] sm:$0xff] %v369
  %548 = vst [vmem:[%s2 + $0x1b0] sm:$0xff] %v480
  %549 = vst [vmem:[%s2 + $0x1b8] sm:$0xff] %v482
  %550 = vst [vmem:[%s2 + $0x1c0] sm:$0xff] %v373
  %551 = vst [vmem:[%s2 + $0x1c8] sm:$0xff] %v375
  %552 = vst [vmem:[%s2 + $0x1d0] sm:$0xff] %v486
  %553 = vst [vmem:[%s2 + $0x1d8] sm:$0xff] %v488
  %554 = vst [vmem:[%s2 + $0x1e0] sm:$0xff] %v377
  %555 = vst [vmem:[%s2 + $0x1e8] sm:$0xff] %v379
  %556 = vst [vmem:[%s2 + $0x1f0] sm:$0xff] %v490
  %557 = vst [vmem:[%s2 + $0x1f8] sm:$0xff] %v492
  // Predicated region
  $region10: #{conv_transpose_block.3} parent=0 // pred_check
    _
  $region11: #{conv_transpose_block.3} parent=0 // pred_check_branch
    %559 = sbr.rel (0) target = $region13
  $region12: #{conv_transpose_block.3} parent=0 // pred_region
    _
  $region13: #{conv_transpose_block.3} parent=0 // pred_fallthru
    _
  // Predicated region
  $region14: #{conv_transpose_block.3} parent=0 // pred_check
    _
  $region15: #{conv_transpose_block.3} parent=0 // pred_check_branch
    %561 = sbr.rel (0) target = $region17
  $region16: #{conv_transpose_block.3} parent=0 // pred_region
    _
  $region17: #{conv_transpose_block.3} parent=0 // pred_fallthru
    _

// kernel: conv_transpose_block.4
$region0: #{conv_transpose_block.4}
  #allocation0 [shape = 'u32[]', space=smem, size = 0x4, offset = 0x4, fixed_abs, tag = 'smem constant byte address 0x4 - core index']
  #allocation1 [shape = 'u32[144,128]{1,0:T(1,128)}', space=vmem, size = 0x12000, scoped, tag = 'internal scratch']
  %s0 = inlined_call_operand.vmem [shape: f32[2,8,512], index: 0, kind: input, shape index: {}]
  %s1 = inlined_call_operand.vmem [shape: f32[2,8,1], index: 1, kind: output, shape index: {0}]
  %s2 = inlined_call_operand.vmem [shape: f32[2,8,1], index: 2, kind: output, shape index: {1}]
  %3 = xla_tuple %s1, %s2
  %s4 = sld [smem:[#allocation0]]
  $region53: #{conv_transpose_block.4} parent=0
    _
  %s6 = ssub.s32 1, %s4
  %s7 = scalar_select 0, %s6, %s4
  loop: start=0, step=1, limit=4
  $region2: #{conv_transpose_block.4} parent=0 // loop_pre_header
    _
  $region3: #{conv_transpose_block.4} parent=0 // loop_header
    %s9 = sphi 0, %s13
    %p10 = scmp.ge.s32.totalorder %s9, 4
    %s16 = sphi 0, %s28
    %s17 = sphi 0, %s24
    %s18 = sphi 0, %s16
    %s19 = sphi 0, %s17
    %s20 = sphi 0, %s18
    %s21 = sphi 0, %s19
    %s33 = sphi 0, %s35
    %s36 = sphi 0, %s33
    %s37 = sphi 0, %s36
    %s53 = sphi 0, %s37
    %s59 = sphi 0, %s61
    %s62 = sphi 0, %s59
    %s63 = sphi 0, %s62
    %s79 = sphi 0, %s63
    %s85 = sphi 0, %s87
    %s88 = sphi 0, %s85
    %s89 = sphi 0, %s88
    %s105 = sphi 0, %s89
  $region4: #{conv_transpose_block.4} parent=0 // loop_header_branch
    %12 = sbr.rel (%p10) target = $region8
  $region5: #{conv_transpose_block.4} parent=0 // loop_body
    %s14 = ssub.s32 %s9, 1
    %s15 = ssub.s32 %s9, 2
    %s22 = sadd.s32 1, %s17
    %p23 = scmp.ge.s32.totalorder %s22, 1
    %s24 = scalar_select %p23, 0, %s22
    %s25 = sadd.s32 1, %s16
    %s26 = scalar_select %p23, %s25, %s16
    %p27 = scmp.ge.s32.totalorder %s26, 2
    %s28 = scalar_select %p27, 0, %s26
    %s29 = ssub.s32 %s16, %s28
    %s30 = ssub.s32 %s17, %s24
    %s31 = sor.u32 %s29, %s30
    %p32 = scmp.eq.s32.totalorder %s31, 0
    %s34 = sadd.s32 %s33, 1
    %s35 = scalar_select %p32, %s33, %s34
    %p38 = pneg %p32
    %p39 = scmp.eq.s32.totalorder %s9, 1
    %p40 = por %p38, %p39
    %p41 = scmp.ne.s32.totalorder %s33, %s36
    %p42 = scmp.eq.s32.totalorder %s9, 0
    %p43 = por %p41, %p42
    %p44 = scmp.ne.s32.totalorder %s33, %s36
    %p45 = scmp.eq.s32.totalorder %s14, 1
    %p46 = por %p44, %p45
    %p47 = scmp.ne.s32.totalorder %s36, %s37
    %p48 = scmp.eq.s32.totalorder %s14, 0
    %p49 = por %p47, %p48
    %p50 = scmp.ne.s32.totalorder %s36, %s37
    %p51 = scmp.eq.s32.totalorder %s15, 1
    %p52 = por %p50, %p51
    %p54 = scmp.ne.s32.totalorder %s37, %s53
    %p55 = scmp.eq.s32.totalorder %s15, 0
    %p56 = por %p54, %p55
    %s57 = ssub.s32 %s16, %s28
    %p58 = scmp.eq.s32.totalorder %s57, 0
    %s60 = sadd.s32 %s59, 1
    %s61 = scalar_select %p58, %s59, %s60
    %p64 = pneg %p58
    %p65 = scmp.eq.s32.totalorder %s9, 1
    %p66 = por %p64, %p65
    %p67 = scmp.ne.s32.totalorder %s59, %s62
    %p68 = scmp.eq.s32.totalorder %s9, 0
    %p69 = por %p67, %p68
    %p70 = scmp.ne.s32.totalorder %s59, %s62
    %p71 = scmp.eq.s32.totalorder %s14, 1
    %p72 = por %p70, %p71
    %p73 = scmp.ne.s32.totalorder %s62, %s63
    %p74 = scmp.eq.s32.totalorder %s14, 0
    %p75 = por %p73, %p74
    %p76 = scmp.ne.s32.totalorder %s62, %s63
    %p77 = scmp.eq.s32.totalorder %s15, 1
    %p78 = por %p76, %p77
    %p80 = scmp.ne.s32.totalorder %s63, %s79
    %p81 = scmp.eq.s32.totalorder %s15, 0
    %p82 = por %p80, %p81
    %s83 = ssub.s32 %s16, %s28
    %p84 = scmp.eq.s32.totalorder %s83, 0
    %s86 = sadd.s32 %s85, 1
    %s87 = scalar_select %p84, %s85, %s86
    %p90 = pneg %p84
    %p91 = scmp.eq.s32.totalorder %s9, 1
    %p92 = por %p90, %p91
    %p93 = scmp.ne.s32.totalorder %s85, %s88
    %p94 = scmp.eq.s32.totalorder %s9, 0
    %p95 = por %p93, %p94
    %p96 = scmp.ne.s32.totalorder %s85, %s88
    %p97 = scmp.eq.s32.totalorder %s14, 1
    %p98 = por %p96, %p97
    %p99 = scmp.ne.s32.totalorder %s88, %s89
    %p100 = scmp.eq.s32.totalorder %s14, 0
    %p101 = por %p99, %p100
    %p102 = scmp.ne.s32.totalorder %s88, %s89
    %p103 = scmp.eq.s32.totalorder %s15, 1
    %p104 = por %p102, %p103
    %p106 = scmp.ne.s32.totalorder %s89, %s105
    %p107 = scmp.eq.s32.totalorder %s15, 0
    %p108 = por %p106, %p107
    %p109 = scmp.le.s32.totalorder 1, %s9
    %p110 = scmp.lt.s32.totalorder %s9, 3
    %p111 = pnand %p109, %p110
    %p112 = pneg %p111
    // Predicated region
    $region9: #{conv_transpose_block.4} parent=5 // pred_check
      _
    $region10: #{conv_transpose_block.4} parent=5 // pred_check_branch
      %114 = sbr.rel (%p111) target = $region12
    $region11: #{conv_transpose_block.4} parent=5 // pred_region
      %s115 = ssub.s32 %s9, 1
    $region12: #{conv_transpose_block.4} parent=5 // pred_fallthru
      _
    %p116 = scmp.lt.s32.totalorder %s9, 2
    // Predicated region
    $region13: #{conv_transpose_block.4} parent=5 // pred_check
      %p117 = pneg %p116
    $region14: #{conv_transpose_block.4} parent=5 // pred_check_branch
      %119 = sbr.rel (%p117) target = $region16
    $region15: #{conv_transpose_block.4} parent=5 // pred_region
      // Predicated region
      $region17: #{conv_transpose_block.4} parent=15 // pred_check
        %p120 = pneg %p43
      $region18: #{conv_transpose_block.4} parent=15 // pred_check_branch
        %122 = sbr.rel (%p120) target = $region20
      $region19: #{conv_transpose_block.4} parent=15 // pred_region
        %s123 = smul.u32 4, %s17
        %p124 = scmp.lt.s32.totalorder %s16, 1
        %s125 = scalar_select %p124, %s16, 1
        %p126 = scmp.lt.s32.totalorder %s123, 3
        %s127 = scalar_select %p126, %s123, 3
        %s128 = smul.addr %s125, 4
        %s129 = sadd.s32 %s127, %s128
        %s130 = smul.addr %s129, 8
        %s131 = scalar_lea.vmem %s0, %s130
        %s132 = smul.u32 4, %s17
      $region20: #{conv_transpose_block.4} parent=15 // pred_fallthru
        _
    $region16: #{conv_transpose_block.4} parent=5 // pred_fallthru
      _
    %p133 = scmp.le.s32.totalorder 1, %s9
    %p134 = scmp.lt.s32.totalorder %s9, 3
    %p135 = pnand %p133, %p134
    %p136 = pneg %p135
    // Predicated region
    $region21: #{conv_transpose_block.4} parent=5 // pred_check
      _
    $region22: #{conv_transpose_block.4} parent=5 // pred_check_branch
      %138 = sbr.rel (%p135) target = $region24
    $region23: #{conv_transpose_block.4} parent=5 // pred_region
      %s139 = ssub.s32 %s9, 1
      %s140 = smul.u32 4, %s19
      %p141 = scmp.lt.s32.totalorder %s18, 1
      %s142 = scalar_select %p141, %s18, 1
      %p143 = scmp.lt.s32.totalorder %s140, 3
      %s144 = scalar_select %p143, %s140, 3
      %s145 = smul.addr %s142, 4
      %s146 = sadd.s32 %s144, %s145
      %s147 = smul.addr %s146, 8
      %s148 = scalar_lea.vmem %s0, %s147
      %p149 = pneg %p49
      %p150 = pneg %p46
      %p151 = pneg %p75
      %p152 = pneg %p72
      %p153 = scmp.lt.s32.totalorder %s18, 1
      %s154 = scalar_select %p153, %s18, 1
      %s155 = smul.addr %s154, 8
      %s156 = scalar_lea.vmem %s1, %s155
      %p157 = pneg %p101
      %p158 = pneg %p98
      %p159 = scmp.lt.s32.totalorder %s18, 1
      %s160 = scalar_select %p159, %s18, 1
      %s161 = smul.addr %s160, 8
      %s162 = scalar_lea.vmem %s2, %s161
      %s163 = smul.u32 4, %s19
      %p164 = scmp.lt.s32.totalorder %s18, 1
      %s165 = scalar_select %p164, %s18, 1
      %p166 = scmp.lt.s32.totalorder %s163, 3
      %s167 = scalar_select %p166, %s163, 3
      %s168 = smul.addr %s165, 4
      %s169 = sadd.s32 %s167, %s168
      %s170 = smul.addr %s169, 8
      %s171 = scalar_lea.vmem %s0, %s170
      %s172 = smul.u32 4, %s19
      %p173 = scmp.lt.s32.totalorder %s18, 1
      %s174 = scalar_select %p173, %s18, 1
      %s175 = smul.addr %s174, 8
      %s176 = scalar_lea.vmem %s1, %s175
      %p177 = scmp.lt.s32.totalorder %s18, 1
      %s178 = scalar_select %p177, %s18, 1
      %s179 = smul.addr %s178, 8
      %s180 = scalar_lea.vmem %s2, %s179
      %p181 = scmp.eq.s32.totalorder %s19, 0
      // Predicated region
      $region25: #{conv_transpose_block.4} parent=23 // pred_check
        %p182 = pneg %p181
      $region26: #{conv_transpose_block.4} parent=23 // pred_check_branch
        %184 = sbr.rel (%p182) target = $region28
      $region27: #{conv_transpose_block.4} parent=23 // pred_region
        %vm185 = vcmask 7168
        %186 = vst.msk [vmem:[%s176] sm:$0xff] %vm185, 0.0
        %187 = vst.msk [vmem:[%s180] sm:$0xff] %vm185, 0.0
      $region28: #{conv_transpose_block.4} parent=23 // pred_fallthru
        _
      %v188 = vld [vmem:[%s171] sm:$0xff]
      %v189 = vld [vmem:[%s171 + $0x8] sm:$0xff]
      %v190 = vld [vmem:[%s171 + $0x10] sm:$0xff]
      %v191 = vld [vmem:[%s171 + $0x18] sm:$0xff]
      %v192 = vld [vmem:[%s176] sm:$0xff]
      %v193 = vadd.f32 %v188, %v189
      %v194 = vadd.f32 %v193, %v190
      %v195 = vadd.f32 %v194, %v191
      %196 = vadd.xlane.f32.xlu0 %v195
      %v197 = vpop.xlane.xlu0 %196
      %v198 = vadd.f32 %v192, %v197
      %vm199 = vcmask 7168
      %200 = vst.msk [vmem:[%s176] sm:$0xff] %vm199, %v198
      %v201 = vld [vmem:[%s180] sm:$0xff]
      %v202 = vmul.f32 %v188, %v188
      %v203 = vmul.f32 %v189, %v189
      %v204 = vmul.f32 %v190, %v190
      %v205 = vmul.f32 %v191, %v191
      %v206 = vadd.f32 %v202, %v203
      %v207 = vadd.f32 %v206, %v204
      %v208 = vadd.f32 %v207, %v205
      %209 = vadd.xlane.f32.xlu0 %v208
      %v210 = vpop.xlane.xlu0 %209
      %v211 = vadd.f32 %v201, %v210
      %212 = vst.msk [vmem:[%s180] sm:$0xff] %vm199, %v211
      // Predicated region
      $region29: #{conv_transpose_block.4} parent=23 // pred_check
        %p213 = pneg %p181
      $region30: #{conv_transpose_block.4} parent=23 // pred_check_branch
        %215 = sbr.rel (%p213) target = $region32
      $region31: #{conv_transpose_block.4} parent=23 // pred_region
        %v216 = vld [vmem:[%s176] sm:$0xff]
        %v217 = vrcp.pop 512.0
        %v218 = vmul.f32 %v216, %v217
        %v219 = vld [vmem:[%s180] sm:$0xff]
        %v220 = vmul.f32 %v219, %v217
        %v221 = vmul.f32 %v218, %v218
        %v222 = vsub.f32 %v220, %v221
        %223 = vst.msk [vmem:[%s176] sm:$0xff] %vm199, %v218
        %v224 = vadd.f32 %v222, 1e-05
        %v225 = vrsqrt.pop %v224
        %226 = vst.msk [vmem:[%s180] sm:$0xff] %vm199, %v225
      $region32: #{conv_transpose_block.4} parent=23 // pred_fallthru
        _
      %p227 = scmp.lt.s32.totalorder %s18, 1
      %s228 = scalar_select %p227, %s18, 1
      %s229 = smul.addr %s228, 8
      %s230 = scalar_lea.vmem %s1, %s229
      %p231 = scmp.lt.s32.totalorder %s18, 1
      %s232 = scalar_select %p231, %s18, 1
      %s233 = smul.addr %s232, 8
      %s234 = scalar_lea.vmem %s2, %s233
      // Predicated region
      $region33: #{conv_transpose_block.4} parent=23 // pred_check
        %p235 = pneg %p72
      $region34: #{conv_transpose_block.4} parent=23 // pred_check_branch
        %237 = sbr.rel (%p235) target = $region36
      $region35: #{conv_transpose_block.4} parent=23 // pred_region
        _
      $region36: #{conv_transpose_block.4} parent=23 // pred_fallthru
        _
      // Predicated region
      $region37: #{conv_transpose_block.4} parent=23 // pred_check
        %p238 = pneg %p98
      $region38: #{conv_transpose_block.4} parent=23 // pred_check_branch
        %240 = sbr.rel (%p238) target = $region40
      $region39: #{conv_transpose_block.4} parent=23 // pred_region
        _
      $region40: #{conv_transpose_block.4} parent=23 // pred_fallthru
        _
    $region24: #{conv_transpose_block.4} parent=5 // pred_fallthru
      _
    %p241 = scmp.le.s32.totalorder 2, %s9
    // Predicated region
    $region41: #{conv_transpose_block.4} parent=5 // pred_check
      %p242 = pneg %p241
    $region42: #{conv_transpose_block.4} parent=5 // pred_check_branch
      %244 = sbr.rel (%p242) target = $region44
    $region43: #{conv_transpose_block.4} parent=5 // pred_region
      %s245 = ssub.s32 %s9, 2
      // Predicated region
      $region45: #{conv_transpose_block.4} parent=43 // pred_check
        %p246 = pneg %p78
      $region46: #{conv_transpose_block.4} parent=43 // pred_check_branch
        %248 = sbr.rel (%p246) target = $region48
      $region47: #{conv_transpose_block.4} parent=43 // pred_region
        %p249 = scmp.lt.s32.totalorder %s20, 1
        %s250 = scalar_select %p249, %s20, 1
        %s251 = smul.addr %s250, 8
        %s252 = scalar_lea.vmem %s1, %s251
      $region48: #{conv_transpose_block.4} parent=43 // pred_fallthru
        _
      // Predicated region
      $region49: #{conv_transpose_block.4} parent=43 // pred_check
        %p253 = pneg %p104
      $region50: #{conv_transpose_block.4} parent=43 // pred_check_branch
        %255 = sbr.rel (%p253) target = $region52
      $region51: #{conv_transpose_block.4} parent=43 // pred_region
        %p256 = scmp.lt.s32.totalorder %s20, 1
        %s257 = scalar_select %p256, %s20, 1
        %s258 = smul.addr %s257, 8
        %s259 = scalar_lea.vmem %s2, %s258
      $region52: #{conv_transpose_block.4} parent=43 // pred_fallthru
        _
    $region44: #{conv_transpose_block.4} parent=5 // pred_fallthru
      _
  $region6: #{conv_transpose_block.4} parent=0 // loop_footer
    %s13 = sadd.s32 1, %s9
  $region7: #{conv_transpose_block.4} parent=0 // loop_footer_branch
    %8 = sbr.rel target = $region3
  $region8: #{conv_transpose_block.4} parent=0 // loop_exit
    _

// kernel: conv_transpose_block.5
$region0: #{conv_transpose_block.5}
  #allocation0 [shape = 'u32[]', space=smem, size = 0x4, offset = 0x4, fixed_abs, tag = 'smem constant byte address 0x4 - core index']
  #allocation1 [shape = 'u32[144,128]{1,0:T(1,128)}', space=vmem, size = 0x12000, scoped, tag = 'internal scratch']
  %s0 = inlined_call_operand.vmem [shape: f32[2,8,512], index: 0, kind: input, shape index: {}]
  %s1 = inlined_call_operand.vmem [shape: f32[2,8,1], index: 1, kind: input, shape index: {}]
  %s2 = inlined_call_operand.vmem [shape: f32[2,8,1], index: 2, kind: input, shape index: {}]
  %s3 = inlined_call_operand.vmem [shape: f32[2,8,512], index: 3, kind: output, shape index: {}]
  %s4 = sld [smem:[#allocation0]]
  $region45: #{conv_transpose_block.5} parent=0
    _
  %s6 = ssub.s32 1, %s4
  %s7 = scalar_select 0, %s6, %s4
  loop: start=0, step=1, limit=4
  $region2: #{conv_transpose_block.5} parent=0 // loop_pre_header
    _
  $region3: #{conv_transpose_block.5} parent=0 // loop_header
    %s9 = sphi 0, %s13
    %p10 = scmp.ge.s32.totalorder %s9, 4
    %s16 = sphi 0, %s28
    %s17 = sphi 0, %s24
    %s18 = sphi 0, %s16
    %s19 = sphi 0, %s17
    %s20 = sphi 0, %s18
    %s21 = sphi 0, %s19
    %s33 = sphi 0, %s35
    %s36 = sphi 0, %s33
    %s37 = sphi 0, %s36
    %s53 = sphi 0, %s37
    %s59 = sphi 0, %s61
    %s62 = sphi 0, %s59
    %s63 = sphi 0, %s62
    %s79 = sphi 0, %s63
    %s85 = sphi 0, %s87
    %s88 = sphi 0, %s85
    %s89 = sphi 0, %s88
    %s105 = sphi 0, %s89
    %s113 = sphi 0, %s115
    %s116 = sphi 0, %s113
    %s117 = sphi 0, %s116
    %s133 = sphi 0, %s117
  $region4: #{conv_transpose_block.5} parent=0 // loop_header_branch
    %12 = sbr.rel (%p10) target = $region8
  $region5: #{conv_transpose_block.5} parent=0 // loop_body
    %s14 = ssub.s32 %s9, 1
    %s15 = ssub.s32 %s9, 2
    %s22 = sadd.s32 1, %s17
    %p23 = scmp.ge.s32.totalorder %s22, 1
    %s24 = scalar_select %p23, 0, %s22
    %s25 = sadd.s32 1, %s16
    %s26 = scalar_select %p23, %s25, %s16
    %p27 = scmp.ge.s32.totalorder %s26, 2
    %s28 = scalar_select %p27, 0, %s26
    %s29 = ssub.s32 %s16, %s28
    %s30 = ssub.s32 %s17, %s24
    %s31 = sor.u32 %s29, %s30
    %p32 = scmp.eq.s32.totalorder %s31, 0
    %s34 = sadd.s32 %s33, 1
    %s35 = scalar_select %p32, %s33, %s34
    %p38 = pneg %p32
    %p39 = scmp.eq.s32.totalorder %s9, 1
    %p40 = por %p38, %p39
    %p41 = scmp.ne.s32.totalorder %s33, %s36
    %p42 = scmp.eq.s32.totalorder %s9, 0
    %p43 = por %p41, %p42
    %p44 = scmp.ne.s32.totalorder %s33, %s36
    %p45 = scmp.eq.s32.totalorder %s14, 1
    %p46 = por %p44, %p45
    %p47 = scmp.ne.s32.totalorder %s36, %s37
    %p48 = scmp.eq.s32.totalorder %s14, 0
    %p49 = por %p47, %p48
    %p50 = scmp.ne.s32.totalorder %s36, %s37
    %p51 = scmp.eq.s32.totalorder %s15, 1
    %p52 = por %p50, %p51
    %p54 = scmp.ne.s32.totalorder %s37, %s53
    %p55 = scmp.eq.s32.totalorder %s15, 0
    %p56 = por %p54, %p55
    %s57 = ssub.s32 %s16, %s28
    %p58 = scmp.eq.s32.totalorder %s57, 0
    %s60 = sadd.s32 %s59, 1
    %s61 = scalar_select %p58, %s59, %s60
    %p64 = pneg %p58
    %p65 = scmp.eq.s32.totalorder %s9, 1
    %p66 = por %p64, %p65
    %p67 = scmp.ne.s32.totalorder %s59, %s62
    %p68 = scmp.eq.s32.totalorder %s9, 0
    %p69 = por %p67, %p68
    %p70 = scmp.ne.s32.totalorder %s59, %s62
    %p71 = scmp.eq.s32.totalorder %s14, 1
    %p72 = por %p70, %p71
    %p73 = scmp.ne.s32.totalorder %s62, %s63
    %p74 = scmp.eq.s32.totalorder %s14, 0
    %p75 = por %p73, %p74
    %p76 = scmp.ne.s32.totalorder %s62, %s63
    %p77 = scmp.eq.s32.totalorder %s15, 1
    %p78 = por %p76, %p77
    %p80 = scmp.ne.s32.totalorder %s63, %s79
    %p81 = scmp.eq.s32.totalorder %s15, 0
    %p82 = por %p80, %p81
    %s83 = ssub.s32 %s16, %s28
    %p84 = scmp.eq.s32.totalorder %s83, 0
    %s86 = sadd.s32 %s85, 1
    %s87 = scalar_select %p84, %s85, %s86
    %p90 = pneg %p84
    %p91 = scmp.eq.s32.totalorder %s9, 1
    %p92 = por %p90, %p91
    %p93 = scmp.ne.s32.totalorder %s85, %s88
    %p94 = scmp.eq.s32.totalorder %s9, 0
    %p95 = por %p93, %p94
    %p96 = scmp.ne.s32.totalorder %s85, %s88
    %p97 = scmp.eq.s32.totalorder %s14, 1
    %p98 = por %p96, %p97
    %p99 = scmp.ne.s32.totalorder %s88, %s89
    %p100 = scmp.eq.s32.totalorder %s14, 0
    %p101 = por %p99, %p100
    %p102 = scmp.ne.s32.totalorder %s88, %s89
    %p103 = scmp.eq.s32.totalorder %s15, 1
    %p104 = por %p102, %p103
    %p106 = scmp.ne.s32.totalorder %s89, %s105
    %p107 = scmp.eq.s32.totalorder %s15, 0
    %p108 = por %p106, %p107
    %s109 = ssub.s32 %s16, %s28
    %s110 = ssub.s32 %s17, %s24
    %s111 = sor.u32 %s109, %s110
    %p112 = scmp.eq.s32.totalorder %s111, 0
    %s114 = sadd.s32 %s113, 1
    %s115 = scalar_select %p112, %s113, %s114
    %p118 = pneg %p112
    %p119 = scmp.eq.s32.totalorder %s9, 1
    %p120 = por %p118, %p119
    %p121 = scmp.ne.s32.totalorder %s113, %s116
    %p122 = scmp.eq.s32.totalorder %s9, 0
    %p123 = por %p121, %p122
    %p124 = scmp.ne.s32.totalorder %s113, %s116
    %p125 = scmp.eq.s32.totalorder %s14, 1
    %p126 = por %p124, %p125
    %p127 = scmp.ne.s32.totalorder %s116, %s117
    %p128 = scmp.eq.s32.totalorder %s14, 0
    %p129 = por %p127, %p128
    %p130 = scmp.ne.s32.totalorder %s116, %s117
    %p131 = scmp.eq.s32.totalorder %s15, 1
    %p132 = por %p130, %p131
    %p134 = scmp.ne.s32.totalorder %s117, %s133
    %p135 = scmp.eq.s32.totalorder %s15, 0
    %p136 = por %p134, %p135
    %p137 = scmp.le.s32.totalorder 1, %s9
    %p138 = scmp.lt.s32.totalorder %s9, 3
    %p139 = pnand %p137, %p138
    %p140 = pneg %p139
    // Predicated region
    $region9: #{conv_transpose_block.5} parent=5 // pred_check
      _
    $region10: #{conv_transpose_block.5} parent=5 // pred_check_branch
      %142 = sbr.rel (%p139) target = $region12
    $region11: #{conv_transpose_block.5} parent=5 // pred_region
      %s143 = ssub.s32 %s9, 1
    $region12: #{conv_transpose_block.5} parent=5 // pred_fallthru
      _
    %p144 = scmp.lt.s32.totalorder %s9, 2
    // Predicated region
    $region13: #{conv_transpose_block.5} parent=5 // pred_check
      %p145 = pneg %p144
    $region14: #{conv_transpose_block.5} parent=5 // pred_check_branch
      %147 = sbr.rel (%p145) target = $region16
    $region15: #{conv_transpose_block.5} parent=5 // pred_region
      // Predicated region
      $region17: #{conv_transpose_block.5} parent=15 // pred_check
        %p148 = pneg %p43
      $region18: #{conv_transpose_block.5} parent=15 // pred_check_branch
        %150 = sbr.rel (%p148) target = $region20
      $region19: #{conv_transpose_block.5} parent=15 // pred_region
        %s151 = smul.u32 4, %s17
        %p152 = scmp.lt.s32.totalorder %s16, 1
        %s153 = scalar_select %p152, %s16, 1
        %p154 = scmp.lt.s32.totalorder %s151, 3
        %s155 = scalar_select %p154, %s151, 3
        %s156 = smul.addr %s153, 4
        %s157 = sadd.s32 %s155, %s156
        %s158 = smul.addr %s157, 8
        %s159 = scalar_lea.vmem %s0, %s158
        %s160 = smul.u32 4, %s17
      $region20: #{conv_transpose_block.5} parent=15 // pred_fallthru
        _
      // Predicated region
      $region21: #{conv_transpose_block.5} parent=15 // pred_check
        %p161 = pneg %p69
      $region22: #{conv_transpose_block.5} parent=15 // pred_check_branch
        %163 = sbr.rel (%p161) target = $region24
      $region23: #{conv_transpose_block.5} parent=15 // pred_region
        %p164 = scmp.lt.s32.totalorder %s16, 1
        %s165 = scalar_select %p164, %s16, 1
        %s166 = smul.addr %s165, 8
        %s167 = scalar_lea.vmem %s1, %s166
      $region24: #{conv_transpose_block.5} parent=15 // pred_fallthru
        _
      // Predicated region
      $region25: #{conv_transpose_block.5} parent=15 // pred_check
        %p168 = pneg %p95
      $region26: #{conv_transpose_block.5} parent=15 // pred_check_branch
        %170 = sbr.rel (%p168) target = $region28
      $region27: #{conv_transpose_block.5} parent=15 // pred_region
        %p171 = scmp.lt.s32.totalorder %s16, 1
        %s172 = scalar_select %p171, %s16, 1
        %s173 = smul.addr %s172, 8
        %s174 = scalar_lea.vmem %s2, %s173
      $region28: #{conv_transpose_block.5} parent=15 // pred_fallthru
        _
    $region16: #{conv_transpose_block.5} parent=5 // pred_fallthru
      _
    %p175 = scmp.le.s32.totalorder 1, %s9
    %p176 = scmp.lt.s32.totalorder %s9, 3
    %p177 = pnand %p175, %p176
    %p178 = pneg %p177
    // Predicated region
    $region29: #{conv_transpose_block.5} parent=5 // pred_check
      _
    $region30: #{conv_transpose_block.5} parent=5 // pred_check_branch
      %180 = sbr.rel (%p177) target = $region32
    $region31: #{conv_transpose_block.5} parent=5 // pred_region
      %s181 = ssub.s32 %s9, 1
      %s182 = smul.u32 4, %s19
      %p183 = scmp.lt.s32.totalorder %s18, 1
      %s184 = scalar_select %p183, %s18, 1
      %p185 = scmp.lt.s32.totalorder %s182, 3
      %s186 = scalar_select %p185, %s182, 3
      %s187 = smul.addr %s184, 4
      %s188 = sadd.s32 %s186, %s187
      %s189 = smul.addr %s188, 8
      %s190 = scalar_lea.vmem %s0, %s189
      %p191 = pneg %p49
      %p192 = pneg %p46
      %p193 = scmp.lt.s32.totalorder %s18, 1
      %s194 = scalar_select %p193, %s18, 1
      %s195 = smul.addr %s194, 8
      %s196 = scalar_lea.vmem %s1, %s195
      %p197 = pneg %p75
      %p198 = pneg %p72
      %p199 = scmp.lt.s32.totalorder %s18, 1
      %s200 = scalar_select %p199, %s18, 1
      %s201 = smul.addr %s200, 8
      %s202 = scalar_lea.vmem %s2, %s201
      %p203 = pneg %p101
      %p204 = pneg %p98
      %p205 = pneg %p129
      %p206 = pneg %p126
      %s207 = smul.u32 4, %s19
      %p208 = scmp.lt.s32.totalorder %s18, 1
      %s209 = scalar_select %p208, %s18, 1
      %p210 = scmp.lt.s32.totalorder %s207, 3
      %s211 = scalar_select %p210, %s207, 3
      %s212 = smul.addr %s209, 4
      %s213 = sadd.s32 %s211, %s212
      %s214 = smul.addr %s213, 8
      %s215 = scalar_lea.vmem %s3, %s214
      %s216 = smul.u32 4, %s19
      %p217 = scmp.lt.s32.totalorder %s18, 1
      %s218 = scalar_select %p217, %s18, 1
      %p219 = scmp.lt.s32.totalorder %s216, 3
      %s220 = scalar_select %p219, %s216, 3
      %s221 = smul.addr %s218, 4
      %s222 = sadd.s32 %s220, %s221
      %s223 = smul.addr %s222, 8
      %s224 = scalar_lea.vmem %s0, %s223
      %s225 = smul.u32 4, %s19
      %p226 = scmp.lt.s32.totalorder %s18, 1
      %s227 = scalar_select %p226, %s18, 1
      %s228 = smul.addr %s227, 8
      %s229 = scalar_lea.vmem %s1, %s228
      %p230 = scmp.lt.s32.totalorder %s18, 1
      %s231 = scalar_select %p230, %s18, 1
      %s232 = smul.addr %s231, 8
      %s233 = scalar_lea.vmem %s2, %s232
      %s234 = smul.u32 4, %s19
      %p235 = scmp.lt.s32.totalorder %s18, 1
      %s236 = scalar_select %p235, %s18, 1
      %p237 = scmp.lt.s32.totalorder %s234, 3
      %s238 = scalar_select %p237, %s234, 3
      %s239 = smul.addr %s236, 4
      %s240 = sadd.s32 %s238, %s239
      %s241 = smul.addr %s240, 8
      %s242 = scalar_lea.vmem %s3, %s241
      %s243 = smul.u32 4, %s19
      %v244 = vld [vmem:[%s224] sm:$0xff]
      %v245 = vld [vmem:[%s224 + $0x8] sm:$0xff]
      %v246 = vld [vmem:[%s224 + $0x10] sm:$0xff]
      %v247 = vld [vmem:[%s224 + $0x18] sm:$0xff]
      %v248 = vld [vmem:[%s229] sm:$0xff]
      %250 = vset.pattern.permute.xlu0 0
      %251 = vperm.xlu0 %250, %v248
      %v252 = vpop.permute.xlu0 %251
      %v254 = vsub.f32 %v244, %v252
      %v255 = vsub.f32 %v245, %v252
      %v256 = vsub.f32 %v246, %v252
      %v257 = vsub.f32 %v247, %v252
      %v258 = vld [vmem:[%s233] sm:$0xff]
      %260 = vset.pattern.permute.xlu0 0
      %261 = vperm.xlu0 %260, %v258
      %v262 = vpop.permute.xlu0 %261
      %v264 = vmul.f32 %v254, %v262
      %v265 = vmul.f32 %v255, %v262
      %v266 = vmul.f32 %v256, %v262
      %v267 = vmul.f32 %v257, %v262
      %vm268 = vcmp.ge.f32.partialorder %v264, 0.0
      %vm269 = vcmp.ge.f32.partialorder %v265, 0.0
      %vm270 = vcmp.ge.f32.partialorder %v266, 0.0
      %vm271 = vcmp.ge.f32.partialorder %v267, 0.0
      %v272 = vmul.f32 %v264, 0.2
      %v273 = vmul.f32 %v265, 0.2
      %v274 = vmul.f32 %v266, 0.2
      %v275 = vmul.f32 %v267, 0.2
      %v276 = vsel %vm268, %v264, %v272
      %v277 = vsel %vm269, %v265, %v273
      %v278 = vsel %vm270, %v266, %v274
      %v279 = vsel %vm271, %v267, %v275
      %280 = vst [vmem:[%s242] sm:$0xff] %v276
      %281 = vst [vmem:[%s242 + $0x8] sm:$0xff] %v277
      %282 = vst [vmem:[%s242 + $0x10] sm:$0xff] %v278
      %283 = vst [vmem:[%s242 + $0x18] sm:$0xff] %v279
      %s284 = smul.u32 4, %s19
      %p285 = scmp.lt.s32.totalorder %s18, 1
      %s286 = scalar_select %p285, %s18, 1
      %p287 = scmp.lt.s32.totalorder %s284, 3
      %s288 = scalar_select %p287, %s284, 3
      %s289 = smul.addr %s286, 4
      %s290 = sadd.s32 %s288, %s289
      %s291 = smul.addr %s290, 8
      %s292 = scalar_lea.vmem %s3, %s291
      // Predicated region
      $region33: #{conv_transpose_block.5} parent=31 // pred_check
        %p293 = pneg %p126
      $region34: #{conv_transpose_block.5} parent=31 // pred_check_branch
        %295 = sbr.rel (%p293) target = $region36
      $region35: #{conv_transpose_block.5} parent=31 // pred_region
        %s296 = smul.u32 4, %s19
      $region36: #{conv_transpose_block.5} parent=31 // pred_fallthru
        _
    $region32: #{conv_transpose_block.5} parent=5 // pred_fallthru
      _
    %p297 = scmp.le.s32.totalorder 2, %s9
    // Predicated region
    $region37: #{conv_transpose_block.5} parent=5 // pred_check
      %p298 = pneg %p297
    $region38: #{conv_transpose_block.5} parent=5 // pred_check_branch
      %300 = sbr.rel (%p298) target = $region40
    $region39: #{conv_transpose_block.5} parent=5 // pred_region
      %s301 = ssub.s32 %s9, 2
      // Predicated region
      $region41: #{conv_transpose_block.5} parent=39 // pred_check
        %p302 = pneg %p132
      $region42: #{conv_transpose_block.5} parent=39 // pred_check_branch
        %304 = sbr.rel (%p302) target = $region44
      $region43: #{conv_transpose_block.5} parent=39 // pred_region
        %s305 = smul.u32 4, %s21
        %p306 = scmp.lt.s32.totalorder %s20, 1
        %s307 = scalar_select %p306, %s20, 1
        %p308 = scmp.lt.s32.totalorder %s305, 3
        %s309 = scalar_select %p308, %s305, 3
        %s310 = smul.addr %s307, 4
        %s311 = sadd.s32 %s309, %s310
        %s312 = smul.addr %s311, 8
        %s313 = scalar_lea.vmem %s3, %s312
      $region44: #{conv_transpose_block.5} parent=39 // pred_fallthru
        _
    $region40: #{conv_transpose_block.5} parent=5 // pred_fallthru
      _
  $region6: #{conv_transpose_block.5} parent=0 // loop_footer
    %s13 = sadd.s32 1, %s9
  $region7: #{conv_transpose_block.5} parent=0 // loop_footer_branch
    %8 = sbr.rel target = $region3
  $region8: #{conv_transpose_block.5} parent=0 // loop_exit
    _

</llo_original>
